<compile_context>
chip_gen: v7x
topology: tpu7x:2x2x1
jax: 0.10.0
libtpu: 0.0.40
codegen_flags: <defaults>
</compile_context>

<pallas_src>
import numpy as np
import jax
import jax.numpy as jnp
from jax import lax
from jax.experimental import pallas as pl
from jax.experimental.pallas import tpu as pltpu


# ----------------------- static preprocessing (once per layer) ---------------

def _bilinear_matrix(n_in: int, n_out: int) -> np.ndarray:
    """Interpolation matrix M (n_out, n_in): out = M @ in (align_corners=True)."""
    M = np.zeros((n_out, n_in), dtype=np.float32)
    if n_in == 1:
        M[:, 0] = 1.0
        return M
    scale = (n_in - 1) / (n_out - 1)
    for o in range(n_out):
        src = o * scale
        f = min(int(np.floor(src)), n_in - 2)
        w = src - f
        M[o, f] = 1.0 - w
        M[o, f + 1] = w
    return M


def prepare_uup_params(w_hwio, b, N, H, W):
    """bEnd=False static operands (weights are static -> computed once)."""
    Cin, Cout = int(w_hwio.shape[2]), int(w_hwio.shape[3])
    w2d = np.asarray(w_hwio, dtype=np.float32).reshape(9 * Cin, Cout)
    # Block-diagonal conv weight: patch slab (rows, W*9*Cin) @ kron(I_W, w2d)
    # yields the (rows, W*Cout) activation slab directly (lane-dense layout).
    wblk = np.kron(np.eye(W, dtype=np.float32), w2d)                 # (W*9Cin, W*Cout)
    b_slab = np.tile(np.asarray(b, np.float32), W).reshape(1, W * Cout)
    # Separable bilinear x2 (align_corners=True):
    #   rows   : kron(I_N, R)   (block-diagonal over batch, tiny)
    #   columns: kron(C, I_Cout)^T acting on the (W*Cout) lane axis
    R = _bilinear_matrix(H, 2 * H)                                   # (2H, H)
    RN = np.kron(np.eye(N, dtype=np.float32), R)                     # (N*2H, N*H)
    kct = np.kron(_bilinear_matrix(W, 2 * W),
                  np.eye(Cout, dtype=np.float32)).T                  # (W*Cout, 2W*Cout)
    return dict(
        wblk=jnp.asarray(wblk, jnp.bfloat16),
        b_slab=jnp.asarray(b_slab, jnp.float32),
        RN=jnp.asarray(RN, jnp.bfloat16),
        kct=jnp.asarray(kct, jnp.bfloat16),
        Cout=Cout,
    )


def prepare_uup_end_params(w1_hwio, b1, w2, b2, W):
    """bEnd=True static operands; channels padded so lane widths are 128-aligned."""
    Cin, Chalf = int(w1_hwio.shape[2]), int(w1_hwio.shape[3])
    Cout = int(w2.shape[1])
    CPAD = int(np.ceil(max(Chalf, Cout, 8) / 8) * 8)                 # -> W*CPAD lanes

    w1_2d = np.asarray(w1_hwio, np.float32).reshape(9 * Cin, Chalf)
    w1_pad = np.zeros((9 * Cin, CPAD), np.float32)
    w1_pad[:, :Chalf] = w1_2d
    b1_pad = np.zeros((CPAD,), np.float32)
    b1_pad[:Chalf] = np.asarray(b1, np.float32)

    w2_pad = np.zeros((CPAD, CPAD), np.float32)
    w2_pad[:Chalf, :Cout] = np.asarray(w2, np.float32)
    b2_pad = np.zeros((CPAD,), np.float32)
    b2_pad[:Cout] = np.asarray(b2, np.float32)

    eyeW = np.eye(W, dtype=np.float32)
    return dict(
        wblk1=jnp.asarray(np.kron(eyeW, w1_pad), jnp.bfloat16),      # (W*9Cin, W*CPAD)
        b1_slab=jnp.asarray(np.tile(b1_pad, W).reshape(1, W * CPAD), jnp.float32),
        wblk2=jnp.asarray(np.kron(eyeW, w2_pad), jnp.bfloat16),      # (W*CPAD, W*CPAD)
        b2_slab=jnp.asarray(np.tile(b2_pad, W).reshape(1, W * CPAD), jnp.float32),
        Cout=Cout,
        CPAD=CPAD,
    )


# ------------------------------ Pallas kernels -------------------------------

def _uup_kernel(p_ref, w_ref, b_ref, kct_ref, rn_ref, o_ref):
    # p_ref  : (N*H, W*9*Cin)    bf16 im2col patch slab (batch folded into M)
    # w_ref  : (W*9*Cin, W*Cout) bf16 kron(I_W, conv weight)
    # b_ref  : (1, W*Cout)       f32  bias tiled over W
    # kct_ref: (W*Cout, 2W*Cout) bf16 column-upsample matrix
    # rn_ref : (N*2H, N*H)       bf16 row-upsample matrix (block-diag over batch)
    # o_ref  : (N*2H, 2W*Cout)   f32  lane-dense output slab
    y = jnp.dot(p_ref[...], w_ref[...], preferred_element_type=jnp.float32)
    y = jnp.maximum(y + b_ref[...], 0.0)                  # bias + ReLU in f32 (VPU)
    # Column expansion first (only H rows), then row expansion: ~2x fewer
    # upsample MXU flops than the reverse order.
    u = jnp.dot(y.astype(jnp.bfloat16), kct_ref[...],
                preferred_element_type=jnp.float32)       # (N*H, 2W*Cout)
    out = jnp.dot(rn_ref[...], u.astype(jnp.bfloat16),
                  preferred_element_type=jnp.float32)     # (N*2H, 2W*Cout)
    o_ref[...] = out.astype(o_ref.dtype)


def _uup_end_kernel(p_ref, w1_ref, b1_ref, w2_ref, b2_ref, o_ref):
    # p_ref : (N*H, W*9*Cin)    bf16
    # w1_ref: (W*9*Cin, W*CPAD) bf16 kron(I_W, conv3x3 weight, channel-padded)
    # b1_ref: (1, W*CPAD)       f32
    # w2_ref: (W*CPAD, W*CPAD)  bf16 kron(I_W, conv1x1 weight, channel-padded)
    # b2_ref: (1, W*CPAD)       f32
    # o_ref : (N*H, W*CPAD)     f32
    y = jnp.dot(p_ref[...], w1_ref[...], preferred_element_type=jnp.float32)
    y = jnp.maximum(y + b1_ref[...], 0.0)                 # Conv3x3 + ReLU
    z = jnp.dot(y.astype(jnp.bfloat16), w2_ref[...],
                preferred_element_type=jnp.float32) + b2_ref[...]
    o_ref[...] = jax.nn.sigmoid(z).astype(o_ref.dtype)    # Conv1x1 + Sigmoid


# ------------------------------- wrappers ------------------------------------

def _im2col_slab(x_nchw):
    """NCHW -> (N*H, W*9*Cin) im2col slab (lane = w*9*Cin + (dy*3+dx)*Cin + ci)."""
    N, Cin, H, W = x_nchw.shape
    x = jnp.transpose(x_nchw, (0, 2, 3, 1))                  # NHWC
    xp = jnp.pad(x, ((0, 0), (1, 1), (1, 1), (0, 0)))
    taps = [xp[:, dy:dy + H, dx:dx + W, :]
            for dy in range(3) for dx in range(3)]
    p = jnp.concatenate(taps, axis=-1)                       # (N, H, W, 9*Cin)
    return p.reshape(N * H, W * 9 * Cin)


def uup_forward(x_nchw, params):
    """bEnd=False: Conv3x3(pad=1)+ReLU -> bilinear Upsample x2 (align_corners)."""
    N, Cin, H, W = x_nchw.shape
    Cout = params["Cout"]
    H2, W2 = 2 * H, 2 * W

    p = _im2col_slab(x_nchw).astype(jnp.bfloat16)            # (N*H, W*9*Cin)

    out_slab = pl.pallas_call(
        _uup_kernel,
        out_shape=jax.ShapeDtypeStruct((N * H2, W2 * Cout), jnp.float32),
        grid=(1,),
        in_specs=[
            pl.BlockSpec((N * H, W * 9 * Cin), lambda i: (0, 0)),
            pl.BlockSpec((W * 9 * Cin, W * Cout), lambda i: (0, 0)),
            pl.BlockSpec((1, W * Cout), lambda i: (0, 0)),
            pl.BlockSpec((W * Cout, W2 * Cout), lambda i: (0, 0)),
            pl.BlockSpec((N * H2, N * H), lambda i: (0, 0)),
        ],
        out_specs=pl.BlockSpec((N * H2, W2 * Cout), lambda i: (0, 0)),
        compiler_params=pltpu.CompilerParams(dimension_semantics=("arbitrary",)),
    )(p, params["wblk"], params["b_slab"], params["kct"], params["RN"])

    out = out_slab.reshape(N, H2, W2, Cout)
    return jnp.transpose(out, (0, 3, 1, 2))                  # -> NCHW


def uup_end_forward(x_nchw, params):
    """bEnd=True: Conv3x3(pad=1)+ReLU -> Conv1x1 -> Sigmoid."""
    N, Cin, H, W = x_nchw.shape
    Cout = params["Cout"]
    CPAD = params["CPAD"]

    p = _im2col_slab(x_nchw).astype(jnp.bfloat16)            # (N*H, W*9*Cin)

    out_slab = pl.pallas_call(
        _uup_end_kernel,
        out_shape=jax.ShapeDtypeStruct((N * H, W * CPAD), jnp.float32),
        grid=(1,),
        in_specs=[
            pl.BlockSpec((N * H, W * 9 * Cin), lambda i: (0, 0)),
            pl.BlockSpec((W * 9 * Cin, W * CPAD), lambda i: (0, 0)),
            pl.BlockSpec((1, W * CPAD), lambda i: (0, 0)),
            pl.BlockSpec((W * CPAD, W * CPAD), lambda i: (0, 0)),
            pl.BlockSpec((1, W * CPAD), lambda i: (0, 0)),
        ],
        out_specs=pl.BlockSpec((N * H, W * CPAD), lambda i: (0, 0)),
        compiler_params=pltpu.CompilerParams(dimension_semantics=("arbitrary",)),
    )(p, params["wblk1"], params["b1_slab"], params["wblk2"], params["b2_slab"])

    out = out_slab.reshape(N, H, W, CPAD)[..., :Cout]        # drop padded channels
    return jnp.transpose(out, (0, 3, 1, 2))                  # -> NCHW


# ---------------------------- pure-JAX reference -----------------------------

def _conv3x3_ref(x_nchw, w_hwio, b):
    w_oihw = jnp.transpose(w_hwio, (3, 2, 0, 1))
    y = lax.conv_general_dilated(x_nchw, w_oihw, (1, 1), ((1, 1), (1, 1)),
                                 dimension_numbers=("NCHW", "OIHW", "NCHW"))
    return y + b[None, :, None, None]


# ----------------------------------- main -------------------------------------

if __name__ == "__main__":
    key = jax.random.PRNGKey(0)
    k_x, k_w, k_b, k_w1, k_b1, k_w2, k_b2 = jax.random.split(key, 7)

    N, Cin, H, W = 2, 4, 16, 16
    Cout_up = 8
    Cout_end = 3
    Chalf = Cin // 2

    x = jax.random.normal(k_x, (N, Cin, H, W), dtype=jnp.float32)

    # ---- bEnd=False parameters: Conv2d(Cin, Cout_up, 3, pad=1) ----
    w_hwio = 0.1 * jax.random.normal(k_w, (3, 3, Cin, Cout_up), dtype=jnp.float32)
    b = 0.1 * jax.random.normal(k_b, (Cout_up,), dtype=jnp.float32)

    up_params = prepare_uup_params(w_hwio, b, N, H, W)       # hoisted: once per layer
    out_up = jax.block_until_ready(uup_forward(x, up_params))

    R = jnp.asarray(_bilinear_matrix(H, 2 * H))
    Cm = jnp.asarray(_bilinear_matrix(W, 2 * W))
    y_ref = jnp.maximum(_conv3x3_ref(x, w_hwio, b), 0.0)
    ref_up = jnp.einsum("oh,pw,nchw->ncop", R, Cm, y_ref)
    np.testing.assert_allclose(np.asarray(out_up), np.asarray(ref_up),
                               rtol=2e-2, atol=2e-2)          # bf16 MXU operands
    assert out_up.shape == (N, Cout_up, 2 * H, 2 * W)

    # ---- bEnd=True parameters: Conv2d(Cin, Chalf, 3) + Conv2d(Chalf, Cout_end, 1) ----
    w1_hwio = 0.1 * jax.random.normal(k_w1, (3, 3, Cin, Chalf), dtype=jnp.float32)
    b1 = 0.1 * jax.random.normal(k_b1, (Chalf,), dtype=jnp.float32)
    w2 = 0.1 * jax.random.normal(k_w2, (Chalf, Cout_end), dtype=jnp.float32)
    b2 = 0.1 * jax.random.normal(k_b2, (Cout_end,), dtype=jnp.float32)

    end_params = prepare_uup_end_params(w1_hwio, b1, w2, b2, W)
    out_end = jax.block_until_ready(uup_end_forward(x, end_params))

    y1 = jnp.maximum(_conv3x3_ref(x, w1_hwio, b1), 0.0)
    ref_end = jax.nn.sigmoid(jnp.einsum("nchw,cd->ndhw", y1, w2)
                             + b2[None, :, None, None])
    np.testing.assert_allclose(np.asarray(out_end), np.asarray(ref_end),
                               rtol=2e-2, atol=2e-2)
    assert out_end.shape == (N, Cout_end, H, W)

    print("KERNEL_OK")
</pallas_src>

<mosaic_0001>
module attributes {stable_mosaic.version = 11 : i64} {
  func.func @_uup_kernel(%arg0: i32, %arg1: memref<32x576xbf16, #tpu.memory_space<vmem>>, %arg2: memref<576x128xbf16, #tpu.memory_space<vmem>>, %arg3: memref<1x128xf32, #tpu.memory_space<vmem>>, %arg4: memref<128x256xbf16, #tpu.memory_space<vmem>>, %arg5: memref<64x32xbf16, #tpu.memory_space<vmem>>, %arg6: memref<64x256xf32, #tpu.memory_space<vmem>>) attributes {dimension_semantics = [#tpu.dimension_semantics<arbitrary>], iteration_bounds = array<i64: 1>, scalar_prefetch = 0 : i64, scratch_operands = 0 : i64, tpu.core_type = #tpu.core_type<tc>, window_params = [{pipeline_mode = #tpu.pipeline_mode<synchronous>, transform_indices = @transform_0, window_bounds = array<i64: 32, 576>}, {pipeline_mode = #tpu.pipeline_mode<synchronous>, transform_indices = @transform_1, window_bounds = array<i64: 576, 128>}, {pipeline_mode = #tpu.pipeline_mode<synchronous>, transform_indices = @transform_2, window_bounds = array<i64: 1, 128>}, {pipeline_mode = #tpu.pipeline_mode<synchronous>, transform_indices = @transform_3, window_bounds = array<i64: 128, 256>}, {pipeline_mode = #tpu.pipeline_mode<synchronous>, transform_indices = @transform_4, window_bounds = array<i64: 64, 32>}, {pipeline_mode = #tpu.pipeline_mode<synchronous>, transform_indices = @transform_5, window_bounds = array<i64: 64, 256>}]} {
    %c0 = arith.constant 0 : index
    %c0_0 = arith.constant 0 : index
    %0 = vector.load %arg1[%c0, %c0_0] : memref<32x576xbf16, #tpu.memory_space<vmem>>, vector<32x576xbf16>
    %c0_1 = arith.constant 0 : index
    %c0_2 = arith.constant 0 : index
    %1 = vector.load %arg2[%c0_1, %c0_2] : memref<576x128xbf16, #tpu.memory_space<vmem>>, vector<576x128xbf16>
    %cst = arith.constant dense<0.000000e+00> : vector<32x128xf32>
    %2 = tpu.matmul %0, %1, %cst {dimension_numbers = #tpu.dot_dimension_numbers<[1], [0], [0], [1], [0, 0, 1, 1], [], []>} : vector<32x576xbf16>, vector<576x128xbf16>, vector<32x128xf32> -> vector<32x128xf32>
    %c0_3 = arith.constant 0 : index
    %c0_4 = arith.constant 0 : index
    %3 = vector.load %arg3[%c0_3, %c0_4] : memref<1x128xf32, #tpu.memory_space<vmem>>, vector<1x128xf32>
    %4 = vector.broadcast %3 : vector<1x128xf32> to vector<32x128xf32>
    %5 = arith.addf %2, %4 : vector<32x128xf32>
    %cst_5 = arith.constant 0.000000e+00 : f32
    %6 = vector.broadcast %cst_5 : f32 to vector<32x128xf32>
    %7 = arith.maximumf %5, %6 : vector<32x128xf32>
    %8 = arith.truncf %7 : vector<32x128xf32> to vector<32x128xbf16>
    %c0_6 = arith.constant 0 : index
    %c0_7 = arith.constant 0 : index
    %9 = vector.load %arg4[%c0_6, %c0_7] : memref<128x256xbf16, #tpu.memory_space<vmem>>, vector<128x256xbf16>
    %cst_8 = arith.constant dense<0.000000e+00> : vector<32x256xf32>
    %10 = tpu.matmul %8, %9, %cst_8 {dimension_numbers = #tpu.dot_dimension_numbers<[1], [0], [0], [1], [0, 0, 1, 1], [], []>} : vector<32x128xbf16>, vector<128x256xbf16>, vector<32x256xf32> -> vector<32x256xf32>
    %c0_9 = arith.constant 0 : index
    %c0_10 = arith.constant 0 : index
    %11 = vector.load %arg5[%c0_9, %c0_10] : memref<64x32xbf16, #tpu.memory_space<vmem>>, vector<64x32xbf16>
    %12 = arith.truncf %10 : vector<32x256xf32> to vector<32x256xbf16>
    %cst_11 = arith.constant dense<0.000000e+00> : vector<64x256xf32>
    %13 = tpu.matmul %11, %12, %cst_11 {dimension_numbers = #tpu.dot_dimension_numbers<[1], [0], [0], [1], [0, 0, 1, 1], [], []>} : vector<64x32xbf16>, vector<32x256xbf16>, vector<64x256xf32> -> vector<64x256xf32>
    %c0_12 = arith.constant 0 : index
    %c0_13 = arith.constant 0 : index
    %14 = vector.load %arg6[%c0_12, %c0_13] : memref<64x256xf32, #tpu.memory_space<vmem>>, vector<64x256xf32>
    tpu.vector_store %arg6[%c0_12, %c0_13], %13 {strides = array<i32>} : memref<64x256xf32, #tpu.memory_space<vmem>>, vector<64x256xf32>,
    return
  }
  func.func @transform_0(%arg0: i32) -> (i32, i32) {
    %c0_i32 = arith.constant 0 : i32
    %c0_i32_0 = arith.constant 0 : i32
    %c0_i32_1 = arith.constant 0 : i32
    return %c0_i32, %c0_i32_0 : i32, i32
  }
  func.func @transform_1(%arg0: i32) -> (i32, i32) {
    %c0_i32 = arith.constant 0 : i32
    %c0_i32_0 = arith.constant 0 : i32
    %c0_i32_1 = arith.constant 0 : i32
    return %c0_i32, %c0_i32_0 : i32, i32
  }
  func.func @transform_2(%arg0: i32) -> (i32, i32) {
    %c0_i32 = arith.constant 0 : i32
    %c0_i32_0 = arith.constant 0 : i32
    %c0_i32_1 = arith.constant 0 : i32
    return %c0_i32, %c0_i32_0 : i32, i32
  }
  func.func @transform_3(%arg0: i32) -> (i32, i32) {
    %c0_i32 = arith.constant 0 : i32
    %c0_i32_0 = arith.constant 0 : i32
    %c0_i32_1 = arith.constant 0 : i32
    return %c0_i32, %c0_i32_0 : i32, i32
  }
  func.func @transform_4(%arg0: i32) -> (i32, i32) {
    %c0_i32 = arith.constant 0 : i32
    %c0_i32_0 = arith.constant 0 : i32
    %c0_i32_1 = arith.constant 0 : i32
    return %c0_i32, %c0_i32_0 : i32, i32
  }
  func.func @transform_5(%arg0: i32) -> (i32, i32) {
    %c0_i32 = arith.constant 0 : i32
    %c0_i32_0 = arith.constant 0 : i32
    %c0_i32_1 = arith.constant 0 : i32
    return %c0_i32, %c0_i32_0 : i32, i32
  }
}

</mosaic_0001>

<llo_original>
// kernel: tpu_custom_call.1
$region0: #{tpu_custom_call.1}
  #allocation0 [shape = 'u32[]', space=smem, size = 0x4, offset = 0x4, fixed_abs, tag = 'smem constant byte address 0x4 - core index']
  #allocation1 [shape = 'u32[144,128]{1,0:T(1,128)}', space=vmem, size = 0x12000, scoped, tag = 'internal scratch']
  %s0 = inlined_call_operand.hbm [shape: bf16[32,576], index: 0, kind: input, shape index: {}]
  %s1 = inlined_call_operand.hbm [shape: bf16[576,128], index: 1, kind: input, shape index: {}]
  %s2 = inlined_call_operand.vmem [shape: f32[1,128], index: 2, kind: input, shape index: {}]
  %s3 = inlined_call_operand.hbm [shape: bf16[128,256], index: 3, kind: input, shape index: {}]
  %s4 = inlined_call_operand.vmem [shape: bf16[64,32], index: 4, kind: input, shape index: {}]
  %s5 = inlined_call_operand.hbm [shape: f32[64,256], index: 5, kind: output, shape index: {}]
  %s6 = sld [smem:[#allocation0]]
  $region42: #{tpu_custom_call.1} parent=0
    _
  %s8 = ssub.s32 1, %s6
  %s9 = scalar_select 0, %s8, %s6
  $region1: #{tpu_custom_call.1} parent=0
    #allocation2 [shape = 'u8[40960]{0}', space=vmem, size = 0xa000, scoped, tag = 'input window, operand 0, single buffered']
    #allocation3 [shape = 's32[1]{0}', space=sflag, size = 0x4, scoped, tag = 'scoped memory for tpu_custom_call.1']
    #allocation4 [shape = 's32[1]{0}', space=sflag, size = 0x4, scoped, tag = 'scoped memory for tpu_custom_call.1']
    #allocation5 [shape = 'u8[147456]{0}', space=vmem, size = 0x24000, scoped, tag = 'input window, operand 1, single buffered']
    #allocation6 [shape = 's32[1]{0}', space=sflag, size = 0x4, scoped, tag = 'scoped memory for tpu_custom_call.1']
    #allocation7 [shape = 'u8[65536]{0}', space=vmem, size = 0x10000, scoped, tag = 'input window, operand 3, single buffered']
    #allocation8 [shape = 'u8[65536]{0}', space=vmem, size = 0x10000, scoped, tag = 'output window, operand 0, single buffered']
    %10 = vsyncpa [#allocation3], 0
    %11 = vsyncpa [#allocation6], 0
    %12 = vsyncpa [#allocation4], 0
    // Predicated region
    $region2: #{tpu_custom_call.1} parent=1 // pred_check
      _
    $region3: #{tpu_custom_call.1} parent=1 // pred_check_branch
      %14 = sbr.rel (0) target = $region5
    $region4: #{tpu_custom_call.1} parent=1 // pred_region
      %s16 = ssub.s32 1280, 1280
      %17 = vsyncadd [#allocation3], %s16
      %s18 = sshll.u32 [#allocation2], 4
      %s19 = int_to_ptr.vmem [resolvable:$true] %s18
      %24 = dma.hbm_to_vmem [thread:$0]  %s0, 1280, %s19, [#allocation3], 320, 320, 20
    $region5: #{tpu_custom_call.1} parent=1 // pred_fallthru
      _
    // Predicated region
    $region6: #{tpu_custom_call.1} parent=1 // pred_check
      _
    $region7: #{tpu_custom_call.1} parent=1 // pred_check_branch
      %26 = sbr.rel (0) target = $region9
    $region8: #{tpu_custom_call.1} parent=1 // pred_region
      %s28 = ssub.s32 4608, 4608
      %29 = vsyncadd [#allocation6], %s28
      %s30 = sshll.u32 [#allocation5], 4
      %s31 = int_to_ptr.vmem [resolvable:$true] %s30
      %36 = dma.hbm_to_vmem [thread:$0]  %s1, 4608, %s31, [#allocation6], 64, 64, 4
    $region9: #{tpu_custom_call.1} parent=1 // pred_fallthru
      _
    // Predicated region
    $region10: #{tpu_custom_call.1} parent=1 // pred_check
      _
    $region11: #{tpu_custom_call.1} parent=1 // pred_check_branch
      %38 = sbr.rel (0) target = $region13
    $region12: #{tpu_custom_call.1} parent=1 // pred_region
      _
    $region13: #{tpu_custom_call.1} parent=1 // pred_fallthru
      _
    // Predicated region
    $region14: #{tpu_custom_call.1} parent=1 // pred_check
      _
    $region15: #{tpu_custom_call.1} parent=1 // pred_check_branch
      %40 = sbr.rel (0) target = $region17
    $region16: #{tpu_custom_call.1} parent=1 // pred_region
      %s42 = ssub.s32 2048, 2048
      %43 = vsyncadd [#allocation6], %s42
      %s44 = sshll.u32 [#allocation7], 4
      %s45 = int_to_ptr.vmem [resolvable:$true] %s44
      %50 = dma.hbm_to_vmem [thread:$0]  %s3, 2048, %s45, [#allocation6], 128, 128, 8
    $region17: #{tpu_custom_call.1} parent=1 // pred_fallthru
      _
    // Predicated region
    $region18: #{tpu_custom_call.1} parent=1 // pred_check
      _
    $region19: #{tpu_custom_call.1} parent=1 // pred_check_branch
      %52 = sbr.rel (0) target = $region21
    $region20: #{tpu_custom_call.1} parent=1 // pred_region
      _
    $region21: #{tpu_custom_call.1} parent=1 // pred_fallthru
      _
    // Predicated region
    $region22: #{tpu_custom_call.1} parent=1 // pred_check
      _
    $region23: #{tpu_custom_call.1} parent=1 // pred_check_branch
      %54 = sbr.rel (0) target = $region25
    $region24: #{tpu_custom_call.1} parent=1 // pred_region
      %55 = dma.done [#allocation3], 1280
    $region25: #{tpu_custom_call.1} parent=1 // pred_fallthru
      _
    // Predicated region
    $region26: #{tpu_custom_call.1} parent=1 // pred_check
      _
    $region27: #{tpu_custom_call.1} parent=1 // pred_check_branch
      %57 = sbr.rel (0) target = $region29
    $region28: #{tpu_custom_call.1} parent=1 // pred_region
      %58 = dma.done [#allocation6], 4608
    $region29: #{tpu_custom_call.1} parent=1 // pred_fallthru
      _
    // Predicated region
    $region30: #{tpu_custom_call.1} parent=1 // pred_check
      _
    $region31: #{tpu_custom_call.1} parent=1 // pred_check_branch
      %60 = sbr.rel (0) target = $region33
    $region32: #{tpu_custom_call.1} parent=1 // pred_region
      %61 = dma.done [#allocation6], 2048
    $region33: #{tpu_custom_call.1} parent=1 // pred_fallthru
      _
    %v63 = vld [vmem:[#allocation2] sm:$0xff]
    %v64 = vld [vmem:[#allocation2 + $0x8] sm:$0xff]
    %v65 = vld [vmem:[#allocation2 + $0x10] sm:$0xf]
    %v66 = vld [vmem:[#allocation2 + $0x14] sm:$0xff]
    %v67 = vld [vmem:[#allocation2 + $0x1c] sm:$0xff]
    %v68 = vld [vmem:[#allocation2 + $0x24] sm:$0xf]
    %v69 = vld [vmem:[#allocation2 + $0x28] sm:$0xff]
    %v70 = vld [vmem:[#allocation2 + $0x30] sm:$0xff]
    %v71 = vld [vmem:[#allocation2 + $0x38] sm:$0xf]
    %v72 = vld [vmem:[#allocation2 + $0x3c] sm:$0xff]
    %v73 = vld [vmem:[#allocation2 + $0x44] sm:$0xff]
    %v74 = vld [vmem:[#allocation2 + $0x4c] sm:$0xf]
    %v75 = vld [vmem:[#allocation5] sm:$0xf]
    %v76 = vld [vmem:[#allocation5 + $0x4] sm:$0xf]
    %v77 = vld [vmem:[#allocation5 + $0x8] sm:$0xf]
    %v78 = vld [vmem:[#allocation5 + $0xc] sm:$0xf]
    %v79 = vld [vmem:[#allocation5 + $0x10] sm:$0xf]
    %v80 = vld [vmem:[#allocation5 + $0x14] sm:$0xf]
    %v81 = vld [vmem:[#allocation5 + $0x18] sm:$0xf]
    %v82 = vld [vmem:[#allocation5 + $0x1c] sm:$0xf]
    %v83 = vld [vmem:[#allocation5 + $0x20] sm:$0xf]
    %v84 = vld [vmem:[#allocation5 + $0x24] sm:$0xf]
    %v85 = vld [vmem:[#allocation5 + $0x28] sm:$0xf]
    %v86 = vld [vmem:[#allocation5 + $0x2c] sm:$0xf]
    %v87 = vld [vmem:[#allocation5 + $0x30] sm:$0xf]
    %v88 = vld [vmem:[#allocation5 + $0x34] sm:$0xf]
    %v89 = vld [vmem:[#allocation5 + $0x38] sm:$0xf]
    %v90 = vld [vmem:[#allocation5 + $0x3c] sm:$0xf]
    %v91 = vld [vmem:[#allocation5 + $0x40] sm:$0xf]
    %v92 = vld [vmem:[#allocation5 + $0x44] sm:$0xf]
    %v93 = vld [vmem:[#allocation5 + $0x48] sm:$0xf]
    %v94 = vld [vmem:[#allocation5 + $0x4c] sm:$0xf]
    %v95 = vld [vmem:[#allocation5 + $0x50] sm:$0xf]
    %v96 = vld [vmem:[#allocation5 + $0x54] sm:$0xf]
    %v97 = vld [vmem:[#allocation5 + $0x58] sm:$0xf]
    %v98 = vld [vmem:[#allocation5 + $0x5c] sm:$0xf]
    %v99 = vld [vmem:[#allocation5 + $0x60] sm:$0xf]
    %v100 = vld [vmem:[#allocation5 + $0x64] sm:$0xf]
    %v101 = vld [vmem:[#allocation5 + $0x68] sm:$0xf]
    %v102 = vld [vmem:[#allocation5 + $0x6c] sm:$0xf]
    %v103 = vld [vmem:[#allocation5 + $0x70] sm:$0xf]
    %v104 = vld [vmem:[#allocation5 + $0x74] sm:$0xf]
    %v105 = vld [vmem:[#allocation5 + $0x78] sm:$0xf]
    %v106 = vld [vmem:[#allocation5 + $0x7c] sm:$0xf]
    %v107 = vld [vmem:[#allocation5 + $0x80] sm:$0xf]
    %v108 = vld [vmem:[#allocation5 + $0x84] sm:$0xf]
    %v109 = vld [vmem:[#allocation5 + $0x88] sm:$0xf]
    %v110 = vld [vmem:[#allocation5 + $0x8c] sm:$0xf]
    %v111 = vld [vmem:[#allocation5 + $0x90] sm:$0xf]
    %v112 = vld [vmem:[#allocation5 + $0x94] sm:$0xf]
    %v113 = vld [vmem:[#allocation5 + $0x98] sm:$0xf]
    %v114 = vld [vmem:[#allocation5 + $0x9c] sm:$0xf]
    %v115 = vld [vmem:[#allocation5 + $0xa0] sm:$0xf]
    %v116 = vld [vmem:[#allocation5 + $0xa4] sm:$0xf]
    %v117 = vld [vmem:[#allocation5 + $0xa8] sm:$0xf]
    %v118 = vld [vmem:[#allocation5 + $0xac] sm:$0xf]
    %v119 = vld [vmem:[#allocation5 + $0xb0] sm:$0xf]
    %v120 = vld [vmem:[#allocation5 + $0xb4] sm:$0xf]
    %v121 = vld [vmem:[#allocation5 + $0xb8] sm:$0xf]
    %v122 = vld [vmem:[#allocation5 + $0xbc] sm:$0xf]
    %v123 = vld [vmem:[#allocation5 + $0xc0] sm:$0xf]
    %v124 = vld [vmem:[#allocation5 + $0xc4] sm:$0xf]
    %v125 = vld [vmem:[#allocation5 + $0xc8] sm:$0xf]
    %v126 = vld [vmem:[#allocation5 + $0xcc] sm:$0xf]
    %v127 = vld [vmem:[#allocation5 + $0xd0] sm:$0xf]
    %v128 = vld [vmem:[#allocation5 + $0xd4] sm:$0xf]
    %v129 = vld [vmem:[#allocation5 + $0xd8] sm:$0xf]
    %v130 = vld [vmem:[#allocation5 + $0xdc] sm:$0xf]
    %v131 = vld [vmem:[#allocation5 + $0xe0] sm:$0xf]
    %v132 = vld [vmem:[#allocation5 + $0xe4] sm:$0xf]
    %v133 = vld [vmem:[#allocation5 + $0xe8] sm:$0xf]
    %v134 = vld [vmem:[#allocation5 + $0xec] sm:$0xf]
    %v135 = vld [vmem:[#allocation5 + $0xf0] sm:$0xf]
    %v136 = vld [vmem:[#allocation5 + $0xf4] sm:$0xf]
    %v137 = vld [vmem:[#allocation5 + $0xf8] sm:$0xf]
    %v138 = vld [vmem:[#allocation5 + $0xfc] sm:$0xf]
    %v139 = vld [vmem:[#allocation5 + $0x100] sm:$0xf]
    %v140 = vld [vmem:[#allocation5 + $0x104] sm:$0xf]
    %v141 = vld [vmem:[#allocation5 + $0x108] sm:$0xf]
    %v142 = vld [vmem:[#allocation5 + $0x10c] sm:$0xf]
    %v143 = vld [vmem:[#allocation5 + $0x110] sm:$0xf]
    %v144 = vld [vmem:[#allocation5 + $0x114] sm:$0xf]
    %v145 = vld [vmem:[#allocation5 + $0x118] sm:$0xf]
    %v146 = vld [vmem:[#allocation5 + $0x11c] sm:$0xf]
    %v147 = vld [vmem:[%s2] sm:$0x1]
    %v149 = vlaneseq
    %v150 = vshrl.u32 %v149, 7
    %v151 = vsub.s32 0, %v150
    %v152 = vrot.slane %v147, %v151
    %v166 = vunpack.c.l.b16 %v63
    %v167 = vunpack.c.h.b16 %v63
    %v168 = vunpack.c.l.b16 %v64
    %v169 = vunpack.c.h.b16 %v64
    %v170 = vunpack.c.l.b16 %v65
    %v171 = vunpack.c.l.b16 %v66
    %v172 = vunpack.c.h.b16 %v66
    %v173 = vunpack.c.l.b16 %v67
    %v174 = vunpack.c.h.b16 %v67
    %v175 = vunpack.c.l.b16 %v68
    %v176 = vunpack.c.l.b16 %v69
    %v177 = vunpack.c.h.b16 %v69
    %v178 = vunpack.c.l.b16 %v70
    %v179 = vunpack.c.h.b16 %v70
    %v180 = vunpack.c.l.b16 %v71
    %v181 = vunpack.c.l.b16 %v72
    %v182 = vunpack.c.h.b16 %v72
    %v183 = vunpack.c.l.b16 %v73
    %v184 = vunpack.c.h.b16 %v73
    %v185 = vunpack.c.l.b16 %v74
    %v186 = vpack.c.b16 %v171, %v166
    %v187 = vpack.c.b16 %v172, %v167
    %v188 = vpack.c.b16 %v173, %v168
    %v189 = vpack.c.b16 %v174, %v169
    %v190 = vpack.c.b16 %v175, %v170
    %v191 = vpack.c.b16 %v181, %v176
    %v192 = vpack.c.b16 %v182, %v177
    %v193 = vpack.c.b16 %v183, %v178
    %v194 = vpack.c.b16 %v184, %v179
    %v195 = vpack.c.b16 %v185, %v180
    %v276 = vunpack.c.l.b16 %v75
    %v277 = vunpack.c.l.b16 %v76
    %v278 = vunpack.c.l.b16 %v77
    %v279 = vunpack.c.l.b16 %v78
    %v280 = vunpack.c.l.b16 %v79
    %v281 = vunpack.c.l.b16 %v80
    %v282 = vunpack.c.l.b16 %v81
    %v283 = vunpack.c.l.b16 %v82
    %v284 = vunpack.c.l.b16 %v83
    %v285 = vunpack.c.l.b16 %v84
    %v286 = vunpack.c.l.b16 %v85
    %v287 = vunpack.c.l.b16 %v86
    %v288 = vunpack.c.l.b16 %v87
    %v289 = vunpack.c.l.b16 %v88
    %v290 = vunpack.c.l.b16 %v89
    %v291 = vunpack.c.l.b16 %v90
    %v292 = vunpack.c.l.b16 %v91
    %v293 = vunpack.c.l.b16 %v92
    %v294 = vunpack.c.l.b16 %v93
    %v295 = vunpack.c.l.b16 %v94
    %v296 = vunpack.c.l.b16 %v95
    %v297 = vunpack.c.l.b16 %v96
    %v298 = vunpack.c.l.b16 %v97
    %v299 = vunpack.c.l.b16 %v98
    %v300 = vunpack.c.l.b16 %v99
    %v301 = vunpack.c.l.b16 %v100
    %v302 = vunpack.c.l.b16 %v101
    %v303 = vunpack.c.l.b16 %v102
    %v304 = vunpack.c.l.b16 %v103
    %v305 = vunpack.c.l.b16 %v104
    %v306 = vunpack.c.l.b16 %v105
    %v307 = vunpack.c.l.b16 %v106
    %v308 = vunpack.c.l.b16 %v107
    %v309 = vunpack.c.l.b16 %v108
    %v310 = vunpack.c.l.b16 %v109
    %v311 = vunpack.c.l.b16 %v110
    %v312 = vunpack.c.l.b16 %v111
    %v313 = vunpack.c.l.b16 %v112
    %v314 = vunpack.c.l.b16 %v113
    %v315 = vunpack.c.l.b16 %v114
    %v316 = vunpack.c.l.b16 %v115
    %v317 = vunpack.c.l.b16 %v116
    %v318 = vunpack.c.l.b16 %v117
    %v319 = vunpack.c.l.b16 %v118
    %v320 = vunpack.c.l.b16 %v119
    %v321 = vunpack.c.l.b16 %v120
    %v322 = vunpack.c.l.b16 %v121
    %v323 = vunpack.c.l.b16 %v122
    %v324 = vunpack.c.l.b16 %v123
    %v325 = vunpack.c.l.b16 %v124
    %v326 = vunpack.c.l.b16 %v125
    %v327 = vunpack.c.l.b16 %v126
    %v328 = vunpack.c.l.b16 %v127
    %v329 = vunpack.c.l.b16 %v128
    %v330 = vunpack.c.l.b16 %v129
    %v331 = vunpack.c.l.b16 %v130
    %v332 = vunpack.c.l.b16 %v131
    %v333 = vunpack.c.l.b16 %v132
    %v334 = vunpack.c.l.b16 %v133
    %v335 = vunpack.c.l.b16 %v134
    %v336 = vunpack.c.l.b16 %v135
    %v337 = vunpack.c.l.b16 %v136
    %v338 = vunpack.c.l.b16 %v137
    %v339 = vunpack.c.l.b16 %v138
    %v340 = vunpack.c.l.b16 %v139
    %v341 = vunpack.c.l.b16 %v140
    %v342 = vunpack.c.l.b16 %v141
    %v343 = vunpack.c.l.b16 %v142
    %v344 = vunpack.c.l.b16 %v143
    %v345 = vunpack.c.l.b16 %v144
    %v346 = vunpack.c.l.b16 %v145
    %v347 = vunpack.c.l.b16 %v146
    %v348 = vpack.c.b16 %v277, %v276
    %v349 = vpack.c.b16 %v279, %v278
    %v350 = vpack.c.b16 %v281, %v280
    %v351 = vpack.c.b16 %v283, %v282
    %v352 = vpack.c.b16 %v285, %v284
    %v353 = vpack.c.b16 %v287, %v286
    %v354 = vpack.c.b16 %v289, %v288
    %v355 = vpack.c.b16 %v291, %v290
    %v356 = vpack.c.b16 %v293, %v292
    %v357 = vpack.c.b16 %v295, %v294
    %v358 = vpack.c.b16 %v297, %v296
    %v359 = vpack.c.b16 %v299, %v298
    %v360 = vpack.c.b16 %v301, %v300
    %v361 = vpack.c.b16 %v303, %v302
    %v362 = vpack.c.b16 %v305, %v304
    %v363 = vpack.c.b16 %v307, %v306
    %v364 = vpack.c.b16 %v309, %v308
    %v365 = vpack.c.b16 %v311, %v310
    %v366 = vpack.c.b16 %v313, %v312
    %v367 = vpack.c.b16 %v315, %v314
    %v368 = vpack.c.b16 %v317, %v316
    %v369 = vpack.c.b16 %v319, %v318
    %v370 = vpack.c.b16 %v321, %v320
    %v371 = vpack.c.b16 %v323, %v322
    %v372 = vpack.c.b16 %v325, %v324
    %v373 = vpack.c.b16 %v327, %v326
    %v374 = vpack.c.b16 %v329, %v328
    %v375 = vpack.c.b16 %v331, %v330
    %v376 = vpack.c.b16 %v333, %v332
    %v377 = vpack.c.b16 %v335, %v334
    %v378 = vpack.c.b16 %v337, %v336
    %v379 = vpack.c.b16 %v339, %v338
    %v380 = vpack.c.b16 %v341, %v340
    %v381 = vpack.c.b16 %v343, %v342
    %v382 = vpack.c.b16 %v345, %v344
    %v383 = vpack.c.b16 %v347, %v346
    %vm420 = vcmask 523264
    %v422 = vsel %vm420, %v190, 0
    %v425 = vsel %vm420, %v195, 0
    %427 = vmatprep.subr.bf16.mxu0 0
    %428 = vmatpush1.bf16.msra.mxu0 %v348
    %429 = vmatprep.subr.bf16.mxu0 0
    %430 = vmatpush1.bf16.msra.mxu0 %v349
    %431 = vmatprep.subr.bf16.mxu0 0
    %432 = vmatpush1.bf16.msra.mxu0 %v350
    %433 = vmatprep.subr.bf16.mxu0 0
    %434 = vmatpush1.bf16.msra.mxu0 %v351
    %435 = vmatprep.subr.bf16.mxu0 0
    %436 = vmatpush1.bf16.msra.mxu0 %v352
    %437 = vmatprep.subr.bf16.mxu0 0
    %438 = vmatpush1.bf16.msra.mxu0 %v353
    %439 = vmatprep.subr.bf16.mxu0 0
    %440 = vmatpush1.bf16.msra.mxu0 %v354
    %441 = vmatprep.subr.bf16.mxu0 0
    %442 = vmatpush1.bf16.msra.mxu0 %v355
    %443 = vmatprep.subr.bf16.mxu0 0
    %444 = vmatpush1.bf16.msra.mxu0 %v356
    %445 = vmatprep.subr.bf16.mxu0 0
    %446 = vmatpush1.bf16.msra.mxu0 %v357
    %447 = vmatprep.subr.bf16.mxu0 0
    %448 = vmatpush1.bf16.msra.mxu0 %v358
    %449 = vmatprep.subr.bf16.mxu0 0
    %450 = vmatpush1.bf16.msra.mxu0 %v359
    %451 = vmatprep.subr.bf16.mxu0 0
    %452 = vmatpush1.bf16.msra.mxu0 %v360
    %453 = vmatprep.subr.bf16.mxu0 0
    %454 = vmatpush1.bf16.msra.mxu0 %v361
    %455 = vmatprep.subr.bf16.mxu0 0
    %456 = vmatpush1.bf16.msra.mxu0 %v362
    %457 = vmatprep.subr.bf16.mxu0 0
    %458 = vmatpush1.bf16.msra.mxu0 %v363
    %459 = vmatprep.mubr.bf16.mxu0 %v187
    %460 = vmatmul.mubr.bf16.gmra.mrb[0].mxu0 %v186
    %v461 = vpop.f32.mrb[0].mxu0
    %v462 = vadd.f32 %v152, %v461
    %v463 = vpop.f32.mrb[0].mxu0
    %v464 = vpop.f32.mrb[0].mxu0
    %v465 = vadd.f32 %v152, %v464
    %v466 = vpop.f32.mrb[0].mxu0
    %467 = vmatprep.mubr.bf16.mxu0 %v192
    %468 = vmatmul.mubr.bf16.gmra.mrb[0].mxu0 %v191
    %v469 = vpop.f32.mrb[0].mxu0
    %v470 = vadd.f32 %v152, %v469
    %v471 = vpop.f32.mrb[0].mxu0
    %v472 = vpop.f32.mrb[0].mxu0
    %v473 = vadd.f32 %v152, %v472
    %v474 = vpop.f32.mrb[0].mxu0
    %475 = vdwg.mxu0
    %476 = vmatprep.subr.bf16.mxu0 0
    %477 = vmatpush1.bf16.msra.mxu0 %v364
    %478 = vmatprep.subr.bf16.mxu0 0
    %479 = vmatpush1.bf16.msra.mxu0 %v365
    %480 = vmatprep.subr.bf16.mxu0 0
    %481 = vmatpush1.bf16.msra.mxu0 %v366
    %482 = vmatprep.subr.bf16.mxu0 0
    %483 = vmatpush1.bf16.msra.mxu0 %v367
    %484 = vmatprep.subr.bf16.mxu0 0
    %485 = vmatpush1.bf16.msra.mxu0 %v368
    %486 = vmatprep.subr.bf16.mxu0 0
    %487 = vmatpush1.bf16.msra.mxu0 %v369
    %488 = vmatprep.subr.bf16.mxu0 0
    %489 = vmatpush1.bf16.msra.mxu0 %v370
    %490 = vmatprep.subr.bf16.mxu0 0
    %491 = vmatpush1.bf16.msra.mxu0 %v371
    %492 = vmatprep.subr.bf16.mxu0 0
    %493 = vmatpush1.bf16.msra.mxu0 %v372
    %494 = vmatprep.subr.bf16.mxu0 0
    %495 = vmatpush1.bf16.msra.mxu0 %v373
    %496 = vmatprep.subr.bf16.mxu0 0
    %497 = vmatpush1.bf16.msra.mxu0 %v374
    %498 = vmatprep.subr.bf16.mxu0 0
    %499 = vmatpush1.bf16.msra.mxu0 %v375
    %500 = vmatprep.subr.bf16.mxu0 0
    %501 = vmatpush1.bf16.msra.mxu0 %v376
    %502 = vmatprep.subr.bf16.mxu0 0
    %503 = vmatpush1.bf16.msra.mxu0 %v377
    %504 = vmatprep.subr.bf16.mxu0 0
    %505 = vmatpush1.bf16.msra.mxu0 %v378
    %506 = vmatprep.subr.bf16.mxu0 0
    %507 = vmatpush1.bf16.msra.mxu0 %v379
    %508 = vmatprep.mubr.bf16.mxu0 %v189
    %509 = vmatmul.mubr.bf16.gmra.mrb[0].mxu0 %v188
    %v510 = vpop.f32.mrb[0].mxu0
    %v511 = vadd.f32 %v462, %v510
    %v512 = vpop.f32.mrb[0].mxu0
    %v513 = vpop.f32.mrb[0].mxu0
    %v514 = vadd.f32 %v465, %v513
    %v515 = vpop.f32.mrb[0].mxu0
    %516 = vmatprep.mubr.bf16.mxu0 %v194
    %517 = vmatmul.mubr.bf16.gmra.mrb[0].mxu0 %v193
    %v518 = vpop.f32.mrb[0].mxu0
    %v519 = vadd.f32 %v470, %v518
    %v520 = vpop.f32.mrb[0].mxu0
    %v521 = vpop.f32.mrb[0].mxu0
    %v522 = vadd.f32 %v473, %v521
    %v523 = vpop.f32.mrb[0].mxu0
    %524 = vdwg.mxu0
    %525 = vmatprep.subr.bf16.mxu0 0
    %526 = vmatpush1.bf16.msra.mxu0 %v380
    %527 = vmatprep.subr.bf16.mxu0 0
    %528 = vmatpush1.bf16.msra.mxu0 %v381
    %529 = vmatprep.subr.bf16.mxu0 0
    %530 = vmatpush1.bf16.msra.mxu0 %v382
    %531 = vmatprep.subr.bf16.mxu0 0
    %532 = vmatpush1.bf16.msra.mxu0 %v383
    %533 = vmatprep.subr.bf16.mxu0 0
    %534 = vmatpush1.bf16.msra.mxu0 0
    %535 = vmatprep.subr.bf16.mxu0 0
    %536 = vmatpush1.bf16.msra.mxu0 0
    %537 = vmatprep.subr.bf16.mxu0 0
    %538 = vmatpush1.bf16.msra.mxu0 0
    %539 = vmatprep.subr.bf16.mxu0 0
    %540 = vmatpush1.bf16.msra.mxu0 0
    %541 = vmatprep.subr.bf16.mxu0 0
    %542 = vmatpush1.bf16.msra.mxu0 0
    %543 = vmatprep.subr.bf16.mxu0 0
    %544 = vmatpush1.bf16.msra.mxu0 0
    %545 = vmatprep.subr.bf16.mxu0 0
    %546 = vmatpush1.bf16.msra.mxu0 0
    %547 = vmatprep.subr.bf16.mxu0 0
    %548 = vmatpush1.bf16.msra.mxu0 0
    %549 = vmatprep.subr.bf16.mxu0 0
    %550 = vmatpush1.bf16.msra.mxu0 0
    %551 = vmatprep.subr.bf16.mxu0 0
    %552 = vmatpush1.bf16.msra.mxu0 0
    %553 = vmatprep.subr.bf16.mxu0 0
    %554 = vmatpush1.bf16.msra.mxu0 0
    %555 = vmatprep.subr.bf16.mxu0 0
    %556 = vmatpush1.bf16.msra.mxu0 0
    %557 = vmatprep.mubr.bf16.mxu0 0
    %558 = vmatmul.mubr.bf16.gmra.mrb[0].mxu0 %v422
    %v559 = vpop.f32.mrb[0].mxu0
    %v560 = vadd.f32 %v511, %v559
    %v561 = vpop.f32.mrb[0].mxu0
    %v562 = vpop.f32.mrb[0].mxu0
    %v563 = vadd.f32 %v514, %v562
    %v564 = vpop.f32.mrb[0].mxu0
    %565 = vmatprep.mubr.bf16.mxu0 0
    %566 = vmatmul.mubr.bf16.gmra.mrb[0].mxu0 %v425
    %v567 = vpop.f32.mrb[0].mxu0
    %v568 = vadd.f32 %v519, %v567
    %v569 = vpop.f32.mrb[0].mxu0
    %v570 = vpop.f32.mrb[0].mxu0
    %v571 = vadd.f32 %v522, %v570
    %v572 = vpop.f32.mrb[0].mxu0
    %573 = vdwg.mxu0
    %v574 = vmax.f32 %v560, 0.0
    %v575 = vmax.f32 %v563, 0.0
    %v576 = vmax.f32 %v568, 0.0
    %v577 = vmax.f32 %v571, 0.0
    %v578 = vpack.c.bf16 %v575, %v574
    %v579 = vpack.c.bf16 %v577, %v576
    %v580 = vld [vmem:[#allocation7] sm:$0xff]
    %v581 = vld [vmem:[#allocation7 + $0x8] sm:$0xff]
    %v582 = vld [vmem:[#allocation7 + $0x10] sm:$0xff]
    %v583 = vld [vmem:[#allocation7 + $0x18] sm:$0xff]
    %v584 = vld [vmem:[#allocation7 + $0x20] sm:$0xff]
    %v585 = vld [vmem:[#allocation7 + $0x28] sm:$0xff]
    %v586 = vld [vmem:[#allocation7 + $0x30] sm:$0xff]
    %v587 = vld [vmem:[#allocation7 + $0x38] sm:$0xff]
    %v588 = vld [vmem:[#allocation7 + $0x40] sm:$0xff]
    %v589 = vld [vmem:[#allocation7 + $0x48] sm:$0xff]
    %v590 = vld [vmem:[#allocation7 + $0x50] sm:$0xff]
    %v591 = vld [vmem:[#allocation7 + $0x58] sm:$0xff]
    %v592 = vld [vmem:[#allocation7 + $0x60] sm:$0xff]
    %v593 = vld [vmem:[#allocation7 + $0x68] sm:$0xff]
    %v594 = vld [vmem:[#allocation7 + $0x70] sm:$0xff]
    %v595 = vld [vmem:[#allocation7 + $0x78] sm:$0xff]
    %v612 = vunpack.c.l.b16 %v580
    %v613 = vunpack.c.h.b16 %v580
    %v614 = vunpack.c.l.b16 %v581
    %v615 = vunpack.c.h.b16 %v581
    %v616 = vunpack.c.l.b16 %v582
    %v617 = vunpack.c.h.b16 %v582
    %v618 = vunpack.c.l.b16 %v583
    %v619 = vunpack.c.h.b16 %v583
    %v620 = vunpack.c.l.b16 %v584
    %v621 = vunpack.c.h.b16 %v584
    %v622 = vunpack.c.l.b16 %v585
    %v623 = vunpack.c.h.b16 %v585
    %v624 = vunpack.c.l.b16 %v586
    %v625 = vunpack.c.h.b16 %v586
    %v626 = vunpack.c.l.b16 %v587
    %v627 = vunpack.c.h.b16 %v587
    %v628 = vunpack.c.l.b16 %v588
    %v629 = vunpack.c.h.b16 %v588
    %v630 = vunpack.c.l.b16 %v589
    %v631 = vunpack.c.h.b16 %v589
    %v632 = vunpack.c.l.b16 %v590
    %v633 = vunpack.c.h.b16 %v590
    %v634 = vunpack.c.l.b16 %v591
    %v635 = vunpack.c.h.b16 %v591
    %v636 = vunpack.c.l.b16 %v592
    %v637 = vunpack.c.h.b16 %v592
    %v638 = vunpack.c.l.b16 %v593
    %v639 = vunpack.c.h.b16 %v593
    %v640 = vunpack.c.l.b16 %v594
    %v641 = vunpack.c.h.b16 %v594
    %v642 = vunpack.c.l.b16 %v595
    %v643 = vunpack.c.h.b16 %v595
    %v644 = vpack.c.b16 %v614, %v612
    %v645 = vpack.c.b16 %v615, %v613
    %v646 = vpack.c.b16 %v618, %v616
    %v647 = vpack.c.b16 %v619, %v617
    %v648 = vpack.c.b16 %v622, %v620
    %v649 = vpack.c.b16 %v623, %v621
    %v650 = vpack.c.b16 %v626, %v624
    %v651 = vpack.c.b16 %v627, %v625
    %v652 = vpack.c.b16 %v630, %v628
    %v653 = vpack.c.b16 %v631, %v629
    %v654 = vpack.c.b16 %v634, %v632
    %v655 = vpack.c.b16 %v635, %v633
    %v656 = vpack.c.b16 %v638, %v636
    %v657 = vpack.c.b16 %v639, %v637
    %v658 = vpack.c.b16 %v642, %v640
    %v659 = vpack.c.b16 %v643, %v641
    %676 = vmatprep.subr.bf16.mxu0 %v645
    %677 = vmatpush1.bf16.msra.mxu0 %v644
    %678 = vmatprep.subr.bf16.mxu0 %v647
    %679 = vmatpush1.bf16.msra.mxu0 %v646
    %680 = vmatprep.subr.bf16.mxu0 %v649
    %681 = vmatpush1.bf16.msra.mxu0 %v648
    %682 = vmatprep.subr.bf16.mxu0 %v651
    %683 = vmatpush1.bf16.msra.mxu0 %v650
    %684 = vmatprep.subr.bf16.mxu0 %v653
    %685 = vmatpush1.bf16.msra.mxu0 %v652
    %686 = vmatprep.subr.bf16.mxu0 %v655
    %687 = vmatpush1.bf16.msra.mxu0 %v654
    %688 = vmatprep.subr.bf16.mxu0 %v657
    %689 = vmatpush1.bf16.msra.mxu0 %v656
    %690 = vmatprep.subr.bf16.mxu0 %v659
    %691 = vmatpush1.bf16.msra.mxu0 %v658
    %692 = vmatprep.subr.bf16.mxu0 0
    %693 = vmatpush1.bf16.msra.mxu0 0
    %694 = vmatprep.subr.bf16.mxu0 0
    %695 = vmatpush1.bf16.msra.mxu0 0
    %696 = vmatprep.subr.bf16.mxu0 0
    %697 = vmatpush1.bf16.msra.mxu0 0
    %698 = vmatprep.subr.bf16.mxu0 0
    %699 = vmatpush1.bf16.msra.mxu0 0
    %700 = vmatprep.subr.bf16.mxu0 0
    %701 = vmatpush1.bf16.msra.mxu0 0
    %702 = vmatprep.subr.bf16.mxu0 0
    %703 = vmatpush1.bf16.msra.mxu0 0
    %704 = vmatprep.subr.bf16.mxu0 0
    %705 = vmatpush1.bf16.msra.mxu0 0
    %706 = vmatprep.subr.bf16.mxu0 0
    %707 = vmatpush1.bf16.msra.mxu0 0
    %708 = vmatprep.mubr.bf16.mxu0 0
    %709 = vmatmul.mubr.bf16.gmra.mrb[0].mxu0 %v578
    %v710 = vpop.f32.mrb[0].mxu0
    %v711 = vadd.f32 0.0, %v710
    %v712 = vpop.f32.mrb[0].mxu0
    %v713 = vadd.f32 0.0, %v712
    %v714 = vpop.f32.mrb[0].mxu0
    %v715 = vadd.f32 0.0, %v714
    %v716 = vpop.f32.mrb[0].mxu0
    %v717 = vadd.f32 0.0, %v716
    %718 = vmatprep.mubr.bf16.mxu0 0
    %719 = vmatmul.mubr.bf16.gmra.mrb[0].mxu0 %v579
    %v720 = vpop.f32.mrb[0].mxu0
    %v721 = vadd.f32 0.0, %v720
    %v722 = vpop.f32.mrb[0].mxu0
    %v723 = vadd.f32 0.0, %v722
    %v724 = vpop.f32.mrb[0].mxu0
    %v725 = vadd.f32 0.0, %v724
    %v726 = vpop.f32.mrb[0].mxu0
    %v727 = vadd.f32 0.0, %v726
    %728 = vdwg.mxu0
    %v729 = vld [vmem:[%s4] sm:$0xf]
    %v730 = vld [vmem:[%s4 + $0x4] sm:$0xf]
    %v731 = vld [vmem:[%s4 + $0x8] sm:$0xf]
    %v732 = vld [vmem:[%s4 + $0xc] sm:$0xf]
    %v733 = vld [vmem:[%s4 + $0x10] sm:$0xf]
    %v734 = vld [vmem:[%s4 + $0x14] sm:$0xf]
    %v735 = vld [vmem:[%s4 + $0x18] sm:$0xf]
    %v736 = vld [vmem:[%s4 + $0x1c] sm:$0xf]
    %v737 = vpack.c.bf16 %v715, %v711
    %v738 = vpack.c.bf16 %v717, %v713
    %v739 = vpack.c.bf16 %v725, %v721
    %v740 = vpack.c.bf16 %v727, %v723
    %v749 = vunpack.c.l.b16 %v729
    %v750 = vunpack.c.l.b16 %v730
    %v751 = vunpack.c.l.b16 %v731
    %v752 = vunpack.c.l.b16 %v732
    %v753 = vunpack.c.l.b16 %v733
    %v754 = vunpack.c.l.b16 %v734
    %v755 = vunpack.c.l.b16 %v735
    %v756 = vunpack.c.l.b16 %v736
    %v757 = vpack.c.b16 %v750, %v749
    %v758 = vpack.c.b16 %v752, %v751
    %v759 = vpack.c.b16 %v754, %v753
    %v760 = vpack.c.b16 %v756, %v755
    %vm761 = vcmask 261120
    %v763 = vsel %vm761, %v757, 0
    %v766 = vsel %vm761, %v758, 0
    %v769 = vsel %vm761, %v759, 0
    %v772 = vsel %vm761, %v760, 0
    %774 = vmatprep.subr.bf16.mxu0 %v738
    %775 = vmatpush1.bf16.msra.mxu0 %v737
    %776 = vmatprep.subr.bf16.mxu0 %v740
    %777 = vmatpush1.bf16.msra.mxu0 %v739
    %778 = vmatprep.subr.bf16.mxu0 0
    %779 = vmatpush1.bf16.msra.mxu0 0
    %780 = vmatprep.subr.bf16.mxu0 0
    %781 = vmatpush1.bf16.msra.mxu0 0
    %782 = vmatprep.subr.bf16.mxu0 0
    %783 = vmatpush1.bf16.msra.mxu0 0
    %784 = vmatprep.subr.bf16.mxu0 0
    %785 = vmatpush1.bf16.msra.mxu0 0
    %786 = vmatprep.subr.bf16.mxu0 0
    %787 = vmatpush1.bf16.msra.mxu0 0
    %788 = vmatprep.subr.bf16.mxu0 0
    %789 = vmatpush1.bf16.msra.mxu0 0
    %790 = vmatprep.subr.bf16.mxu0 0
    %791 = vmatpush1.bf16.msra.mxu0 0
    %792 = vmatprep.subr.bf16.mxu0 0
    %793 = vmatpush1.bf16.msra.mxu0 0
    %794 = vmatprep.subr.bf16.mxu0 0
    %795 = vmatpush1.bf16.msra.mxu0 0
    %796 = vmatprep.subr.bf16.mxu0 0
    %797 = vmatpush1.bf16.msra.mxu0 0
    %798 = vmatprep.subr.bf16.mxu0 0
    %799 = vmatpush1.bf16.msra.mxu0 0
    %800 = vmatprep.subr.bf16.mxu0 0
    %801 = vmatpush1.bf16.msra.mxu0 0
    %802 = vmatprep.subr.bf16.mxu0 0
    %803 = vmatpush1.bf16.msra.mxu0 0
    %804 = vmatprep.subr.bf16.mxu0 0
    %805 = vmatpush1.bf16.msra.mxu0 0
    %806 = vmatprep.mubr.bf16.mxu0 0
    %807 = vmatmul.mubr.bf16.gmra.mrb[0].mxu0 %v763
    %v808 = vpop.f32.mrb[0].mxu0
    %v809 = vadd.f32 0.0, %v808
    %v810 = vpop.f32.mrb[0].mxu0
    %v811 = vadd.f32 0.0, %v810
    %v812 = vpop.f32.mrb[0].mxu0
    %v813 = vadd.f32 0.0, %v812
    %v814 = vpop.f32.mrb[0].mxu0
    %v815 = vadd.f32 0.0, %v814
    %816 = vmatprep.mubr.bf16.mxu0 0
    %817 = vmatmul.mubr.bf16.gmra.mrb[0].mxu0 %v766
    %v818 = vpop.f32.mrb[0].mxu0
    %v819 = vadd.f32 0.0, %v818
    %v820 = vpop.f32.mrb[0].mxu0
    %v821 = vadd.f32 0.0, %v820
    %v822 = vpop.f32.mrb[0].mxu0
    %v823 = vadd.f32 0.0, %v822
    %v824 = vpop.f32.mrb[0].mxu0
    %v825 = vadd.f32 0.0, %v824
    %826 = vmatprep.mubr.bf16.mxu0 0
    %827 = vmatmul.mubr.bf16.gmra.mrb[0].mxu0 %v769
    %v828 = vpop.f32.mrb[0].mxu0
    %v829 = vadd.f32 0.0, %v828
    %v830 = vpop.f32.mrb[0].mxu0
    %v831 = vadd.f32 0.0, %v830
    %v832 = vpop.f32.mrb[0].mxu0
    %v833 = vadd.f32 0.0, %v832
    %v834 = vpop.f32.mrb[0].mxu0
    %v835 = vadd.f32 0.0, %v834
    %836 = vmatprep.mubr.bf16.mxu0 0
    %837 = vmatmul.mubr.bf16.gmra.mrb[0].mxu0 %v772
    %v838 = vpop.f32.mrb[0].mxu0
    %v839 = vadd.f32 0.0, %v838
    %v840 = vpop.f32.mrb[0].mxu0
    %v841 = vadd.f32 0.0, %v840
    %v842 = vpop.f32.mrb[0].mxu0
    %v843 = vadd.f32 0.0, %v842
    %v844 = vpop.f32.mrb[0].mxu0
    %v845 = vadd.f32 0.0, %v844
    %846 = vdwg.mxu0
    %847 = vst [vmem:[#allocation8] sm:$0xff] %v809
    %848 = vst [vmem:[#allocation8 + $0x8] sm:$0xff] %v811
    %849 = vst [vmem:[#allocation8 + $0x10] sm:$0xff] %v813
    %850 = vst [vmem:[#allocation8 + $0x18] sm:$0xff] %v815
    %851 = vst [vmem:[#allocation8 + $0x20] sm:$0xff] %v819
    %852 = vst [vmem:[#allocation8 + $0x28] sm:$0xff] %v821
    %853 = vst [vmem:[#allocation8 + $0x30] sm:$0xff] %v823
    %854 = vst [vmem:[#allocation8 + $0x38] sm:$0xff] %v825
    %855 = vst [vmem:[#allocation8 + $0x40] sm:$0xff] %v829
    %856 = vst [vmem:[#allocation8 + $0x48] sm:$0xff] %v831
    %857 = vst [vmem:[#allocation8 + $0x50] sm:$0xff] %v833
    %858 = vst [vmem:[#allocation8 + $0x58] sm:$0xff] %v835
    %859 = vst [vmem:[#allocation8 + $0x60] sm:$0xff] %v839
    %860 = vst [vmem:[#allocation8 + $0x68] sm:$0xff] %v841
    %861 = vst [vmem:[#allocation8 + $0x70] sm:$0xff] %v843
    %862 = vst [vmem:[#allocation8 + $0x78] sm:$0xff] %v845
    // Predicated region
    $region34: #{tpu_custom_call.1} parent=1 // pred_check
      _
    $region35: #{tpu_custom_call.1} parent=1 // pred_check_branch
      %864 = sbr.rel (0) target = $region37
    $region36: #{tpu_custom_call.1} parent=1 // pred_region
      %s866 = ssub.s32 2048, 2048
      %867 = vsyncadd [#allocation4], %s866
      %s868 = sshll.u32 [#allocation8], 4
      %s869 = int_to_ptr.vmem [resolvable:$true] %s868
      %874 = dma.vmem_to_hbm [thread:$0]  %s869, 2048, %s5, [#allocation4], 256, 256, 16
    $region37: #{tpu_custom_call.1} parent=1 // pred_fallthru
      _
    // Predicated region
    $region38: #{tpu_custom_call.1} parent=1 // pred_check
      _
    $region39: #{tpu_custom_call.1} parent=1 // pred_check_branch
      %876 = sbr.rel (0) target = $region41
    $region40: #{tpu_custom_call.1} parent=1 // pred_region
      %877 = dma.done [#allocation4], 2048
    $region41: #{tpu_custom_call.1} parent=1 // pred_fallthru
      _
    %878 = vsyncpa [#allocation3], 1
    %879 = vsyncpa [#allocation6], 1
    %880 = vsyncpa [#allocation4], 1

</llo_original>
